<compile_context>
chip_gen: v6e
topology: v6e:2x2x1
jax: 0.10.0
libtpu: 0.0.40
codegen_flags: <defaults>
</compile_context>

<pallas_src>
import functools

import jax
import jax.numpy as jnp
from jax.experimental import pallas as pl
from jax.experimental.pallas import tpu as pltpu


def _round_up(x, m):
    return (x + m - 1) // m * m


def _triplet_loss_kernel(a_ref, p_ref, n_ref, o_ref, *, margin, batch, block_b,
                         needs_mask):
    # Compute in f32 regardless of input dtype (bf16 inputs halve HBM traffic).
    a = a_ref[...].astype(jnp.float32)
    p = p_ref[...].astype(jnp.float32)
    n = n_ref[...].astype(jnp.float32)

    dp = a - p
    dn = a - n
    # Fused single cross-lane reduce; keep intermediates 2-D.
    diff = jnp.sum(dp * dp - dn * dn, axis=1, keepdims=True)  # (block_b, 1)
    losses = jnp.maximum(diff + jnp.float32(margin), jnp.float32(0.0))

    if needs_mask:
        # Zero out contributions from zero-padded rows (global row >= batch).
        i = pl.program_id(0)
        row = i * block_b + jax.lax.broadcasted_iota(jnp.int32, (block_b, 1), 0)
        losses = jnp.where(row < batch, losses, jnp.float32(0.0))

    # Per-tile partial sum; grid axis stays fully parallel (megacore-friendly).
    o_ref[0, 0] = jnp.sum(losses)


def triplet_loss(anchor, positive, negative, margin=1.0, block_b=None):
    """Mean triplet loss over the batch. anchor/positive/negative: (B, D)."""
    B, D = anchor.shape
    assert positive.shape == (B, D) and negative.shape == (B, D)

    itemsize = jnp.dtype(anchor.dtype).itemsize

    if block_b is None:
        # Target ~2 MiB per input tile: 3 inputs x 2 buffers ~= 12 MiB of VMEM,
        # safe on v5e/v6e (128 MiB) and v7x (64 MiB per TC).
        target_tile_bytes = 2 * 1024 * 1024
        rows = (target_tile_bytes // max(1, D * itemsize)) // 8 * 8
        block_b = max(8, min(_round_up(B, 8), rows))
    block_b = max(8, _round_up(block_b, 8))

    B_pad = _round_up(B, block_b)
    needs_mask = B_pad != B
    if needs_mask:
        pad = ((0, B_pad - B), (0, 0))
        anchor = jnp.pad(anchor, pad)
        positive = jnp.pad(positive, pad)
        negative = jnp.pad(negative, pad)

    num_tiles = B_pad // block_b

    kernel = functools.partial(
        _triplet_loss_kernel,
        margin=margin, batch=B, block_b=block_b, needs_mask=needs_mask,
    )

    # Last block dim = full D (allowed even when D is not a multiple of 128).
    row_spec = pl.BlockSpec((block_b, D), lambda i: (i, 0))

    partials = pl.pallas_call(
        kernel,
        out_shape=jax.ShapeDtypeStruct((num_tiles, 1), jnp.float32),
        grid_spec=pltpu.PrefetchScalarGridSpec(
            num_scalar_prefetch=0,
            grid=(num_tiles,),
            in_specs=[row_spec, row_spec, row_spec],
            out_specs=pl.BlockSpec(
                (1, 1), lambda i: (i, 0), memory_space=pltpu.SMEM
            ),
        ),
        compiler_params=pltpu.CompilerParams(
            dimension_semantics=("parallel",),       # independent tiles -> megacore OK
            vmem_limit_bytes=32 * 1024 * 1024,       # room for large double-buffered tiles
        ),
    )(anchor, positive, negative)

    return jnp.sum(partials) / jnp.float32(B)


def triplet_loss_ref(anchor, positive, negative, margin=1.0):
    a = anchor.astype(jnp.float32)
    p = positive.astype(jnp.float32)
    n = negative.astype(jnp.float32)
    dp = jnp.sum((a - p) ** 2, axis=1)
    dn = jnp.sum((a - n) ** 2, axis=1)
    return jnp.mean(jnp.maximum(dp - dn + margin, 0.0))


if __name__ == "__main__":
    key = jax.random.PRNGKey(0)

    # Case 1: batch divisible by tile (no masking path).
    B, D = 16, 32
    k_a, k_p, k_n, key = jax.random.split(key, 4)
    anchor = jax.random.normal(k_a, (B, D), dtype=jnp.float32)
    positive = jax.random.normal(k_p, (B, D), dtype=jnp.float32)
    negative = jax.random.normal(k_n, (B, D), dtype=jnp.float32)

    out = jax.block_until_ready(triplet_loss(anchor, positive, negative, margin=1.0))
    ref = triplet_loss_ref(anchor, positive, negative, margin=1.0)
    assert jnp.allclose(out, ref, rtol=1e-5, atol=1e-5), (out, ref)

    # Case 2: ragged batch (exercises padding + in-kernel masking), small tile
    # forced so the grid has multiple steps.
    B2, D2 = 13, 32
    k_a, k_p, k_n, key = jax.random.split(key, 4)
    a2 = jax.random.normal(k_a, (B2, D2), dtype=jnp.float32)
    p2 = jax.random.normal(k_p, (B2, D2), dtype=jnp.float32)
    n2 = jax.random.normal(k_n, (B2, D2), dtype=jnp.float32)

    out2 = jax.block_until_ready(triplet_loss(a2, p2, n2, margin=1.0, block_b=8))
    ref2 = triplet_loss_ref(a2, p2, n2, margin=1.0)
    assert jnp.allclose(out2, ref2, rtol=1e-5, atol=1e-5), (out2, ref2)

    print("KERNEL_OK")
</pallas_src>

<mosaic_0001>
module attributes {stable_mosaic.version = 11 : i64} {
  func.func @_triplet_loss_kernel(%arg0: i32, %arg1: memref<16x32xf32, #tpu.memory_space<vmem>>, %arg2: memref<16x32xf32, #tpu.memory_space<vmem>>, %arg3: memref<16x32xf32, #tpu.memory_space<vmem>>, %arg4: memref<1x1xf32, #tpu.memory_space<smem>>) attributes {dimension_semantics = [#tpu.dimension_semantics<parallel>], iteration_bounds = array<i64: 1>, scalar_prefetch = 0 : i64, scratch_operands = 0 : i64, tpu.core_type = #tpu.core_type<tc>, window_params = [{transform_indices = @transform_0, window_bounds = array<i64: 16, 32>}, {transform_indices = @transform_1, window_bounds = array<i64: 16, 32>}, {transform_indices = @transform_2, window_bounds = array<i64: 16, 32>}, {transform_indices = @transform_3, window_bounds = array<i64: 1, 1>}]} {
    %c0 = arith.constant 0 : index
    %c0_0 = arith.constant 0 : index
    %0 = vector.load %arg1[%c0, %c0_0] : memref<16x32xf32, #tpu.memory_space<vmem>>, vector<16x32xf32>
    %c0_1 = arith.constant 0 : index
    %c0_2 = arith.constant 0 : index
    %1 = vector.load %arg2[%c0_1, %c0_2] : memref<16x32xf32, #tpu.memory_space<vmem>>, vector<16x32xf32>
    %c0_3 = arith.constant 0 : index
    %c0_4 = arith.constant 0 : index
    %2 = vector.load %arg3[%c0_3, %c0_4] : memref<16x32xf32, #tpu.memory_space<vmem>>, vector<16x32xf32>
    %3 = arith.subf %0, %1 : vector<16x32xf32>
    %4 = arith.subf %0, %2 : vector<16x32xf32>
    %5 = arith.mulf %3, %3 : vector<16x32xf32>
    %6 = arith.mulf %4, %4 : vector<16x32xf32>
    %7 = arith.subf %5, %6 : vector<16x32xf32>
    %cst = arith.constant dense<0.000000e+00> : vector<16xf32>
    %8 = vector.multi_reduction <add>, %7, %cst [1] : vector<16x32xf32> to vector<16xf32>
    %9 = vector.shape_cast %8 : vector<16xf32> to vector<16x1xf32>
    %cst_5 = arith.constant 1.000000e+00 : f32
    %10 = vector.broadcast %cst_5 : f32 to vector<16x1xf32>
    %11 = arith.addf %9, %10 : vector<16x1xf32>
    %cst_6 = arith.constant 0.000000e+00 : f32
    %12 = vector.broadcast %cst_6 : f32 to vector<16x1xf32>
    %13 = arith.maximumf %11, %12 : vector<16x1xf32>
    %14 = vector.shape_cast %13 : vector<16x1xf32> to vector<1x16x1xf32>
    %cst_7 = arith.constant dense<0.000000e+00> : vector<1xf32>
    %15 = vector.multi_reduction <add>, %14, %cst_7 [1, 2] : vector<1x16x1xf32> to vector<1xf32>
    %16 = vector.shape_cast %15 : vector<1xf32> to vector<1x1x1xf32>
    %17 = vector.extract %16[0, 0, 0] : f32 from vector<1x1x1xf32>
    %c0_8 = arith.constant 0 : index
    %c0_9 = arith.constant 0 : index
    %18 = memref.load %arg4[%c0_8, %c0_9] : memref<1x1xf32, #tpu.memory_space<smem>>
    memref.store %17, %arg4[%c0_8, %c0_9] : memref<1x1xf32, #tpu.memory_space<smem>>
    return
  }
  func.func @transform_0(%arg0: i32) -> (i32, i32) {
    %c0_i32 = arith.constant 0 : i32
    %c0_i32_0 = arith.constant 0 : i32
    return %arg0, %c0_i32 : i32, i32
  }
  func.func @transform_1(%arg0: i32) -> (i32, i32) {
    %c0_i32 = arith.constant 0 : i32
    %c0_i32_0 = arith.constant 0 : i32
    return %arg0, %c0_i32 : i32, i32
  }
  func.func @transform_2(%arg0: i32) -> (i32, i32) {
    %c0_i32 = arith.constant 0 : i32
    %c0_i32_0 = arith.constant 0 : i32
    return %arg0, %c0_i32 : i32, i32
  }
  func.func @transform_3(%arg0: i32) -> (i32, i32) {
    %c0_i32 = arith.constant 0 : i32
    %c0_i32_0 = arith.constant 0 : i32
    return %arg0, %c0_i32 : i32, i32
  }
}

</mosaic_0001>

<llo_original>
// kernel: tpu_custom_call.1
$region0: #{tpu_custom_call.1}
  #allocation0 [shape = 'u32[]', space=smem, size = 0x4, offset = 0x4, fixed_abs, tag = 'smem constant byte address 0x4 - core index']
  #allocation1 [shape = 'u32[144,128]{1,0:T(1,128)}', space=vmem, size = 0x12000, scoped, tag = 'internal scratch']
  %s0 = inlined_call_operand.hbm [shape: f32[16,32], index: 0, kind: input, shape index: {}]
  %s1 = inlined_call_operand.hbm [shape: f32[16,32], index: 1, kind: input, shape index: {}]
  %s2 = inlined_call_operand.hbm [shape: f32[16,32], index: 2, kind: input, shape index: {}]
  %s3 = inlined_call_operand.hbm [shape: f32[1,1], index: 3, kind: output, shape index: {}]
  %s4 = sld [smem:[#allocation0]]
  $region34: #{tpu_custom_call.1} parent=0
    _
  %s6 = ssub.s32 1, %s4
  %s7 = scalar_select 0, %s6, %s4
  $region1: #{tpu_custom_call.1} parent=0
    #allocation2 [shape = 'u8[8192]{0}', space=vmem, size = 0x2000, scoped, tag = 'input window, operand 0, single buffered']
    #allocation3 [shape = 's32[1]{0}', space=sflag, size = 0x4, scoped, tag = 'scoped memory for tpu_custom_call.1']
    #allocation4 [shape = 's32[1]{0}', space=sflag, size = 0x4, scoped, tag = 'scoped memory for tpu_custom_call.1']
    #allocation5 [shape = 'u8[8192]{0}', space=vmem, size = 0x2000, scoped, tag = 'input window, operand 1, single buffered']
    #allocation6 [shape = 's32[1]{0}', space=sflag, size = 0x4, scoped, tag = 'scoped memory for tpu_custom_call.1']
    #allocation7 [shape = 'u8[8192]{0}', space=vmem, size = 0x2000, scoped, tag = 'input window, operand 2, single buffered']
    #allocation8 [shape = 'u8[512]{0}', space=smem, size = 0x200, scoped, tag = 'output window, operand 0, single buffered']
    %8 = vsyncpa [#allocation3], 0
    %9 = vsyncpa [#allocation6], 0
    %10 = vsyncpa [#allocation4], 0
    // Predicated region
    $region2: #{tpu_custom_call.1} parent=1 // pred_check
      _
    $region3: #{tpu_custom_call.1} parent=1 // pred_check_branch
      %12 = sbr.rel (0) target = $region5
    $region4: #{tpu_custom_call.1} parent=1 // pred_region
      %s14 = ssub.s32 256, 256
      %15 = vsyncadd [#allocation3], %s14
      %s16 = sshll.u32 [#allocation2], 4
      %s17 = int_to_ptr.vmem [resolvable:$true] %s16
      %22 = dma.hbm_to_vmem [thread:$0]  %s0, 256, %s17, [#allocation3], 128, 128, 8
    $region5: #{tpu_custom_call.1} parent=1 // pred_fallthru
      _
    // Predicated region
    $region6: #{tpu_custom_call.1} parent=1 // pred_check
      _
    $region7: #{tpu_custom_call.1} parent=1 // pred_check_branch
      %24 = sbr.rel (0) target = $region9
    $region8: #{tpu_custom_call.1} parent=1 // pred_region
      %s26 = ssub.s32 256, 256
      %27 = vsyncadd [#allocation6], %s26
      %s28 = sshll.u32 [#allocation5], 4
      %s29 = int_to_ptr.vmem [resolvable:$true] %s28
      %34 = dma.hbm_to_vmem [thread:$0]  %s1, 256, %s29, [#allocation6], 128, 128, 8
    $region9: #{tpu_custom_call.1} parent=1 // pred_fallthru
      _
    // Predicated region
    $region10: #{tpu_custom_call.1} parent=1 // pred_check
      _
    $region11: #{tpu_custom_call.1} parent=1 // pred_check_branch
      %36 = sbr.rel (0) target = $region13
    $region12: #{tpu_custom_call.1} parent=1 // pred_region
      %s38 = ssub.s32 256, 256
      %39 = vsyncadd [#allocation6], %s38
      %s40 = sshll.u32 [#allocation7], 4
      %s41 = int_to_ptr.vmem [resolvable:$true] %s40
      %46 = dma.hbm_to_vmem [thread:$0]  %s2, 256, %s41, [#allocation6], 128, 128, 8
    $region13: #{tpu_custom_call.1} parent=1 // pred_fallthru
      _
    // Predicated region
    $region14: #{tpu_custom_call.1} parent=1 // pred_check
      _
    $region15: #{tpu_custom_call.1} parent=1 // pred_check_branch
      %48 = sbr.rel (0) target = $region17
    $region16: #{tpu_custom_call.1} parent=1 // pred_region
      %49 = dma.done [#allocation3], 256
    $region17: #{tpu_custom_call.1} parent=1 // pred_fallthru
      _
    // Predicated region
    $region18: #{tpu_custom_call.1} parent=1 // pred_check
      _
    $region19: #{tpu_custom_call.1} parent=1 // pred_check_branch
      %51 = sbr.rel (0) target = $region21
    $region20: #{tpu_custom_call.1} parent=1 // pred_region
      %52 = dma.done [#allocation6], 256
    $region21: #{tpu_custom_call.1} parent=1 // pred_fallthru
      _
    // Predicated region
    $region22: #{tpu_custom_call.1} parent=1 // pred_check
      _
    $region23: #{tpu_custom_call.1} parent=1 // pred_check_branch
      %54 = sbr.rel (0) target = $region25
    $region24: #{tpu_custom_call.1} parent=1 // pred_region
      %55 = dma.done [#allocation6], 256
    $region25: #{tpu_custom_call.1} parent=1 // pred_fallthru
      _
    %v56 = vld [vmem:[#allocation2] sm:$0xff]
    %v57 = vld [vmem:[#allocation2 + $0x8] sm:$0xff]
    %v58 = vld [vmem:[#allocation5] sm:$0xff]
    %v59 = vld [vmem:[#allocation5 + $0x8] sm:$0xff]
    %v60 = vld [vmem:[#allocation7] sm:$0xff]
    %v61 = vld [vmem:[#allocation7 + $0x8] sm:$0xff]
    %v62 = vsub.f32 %v56, %v58
    %v63 = vsub.f32 %v57, %v59
    %v64 = vsub.f32 %v56, %v60
    %v65 = vsub.f32 %v57, %v61
    %v66 = vmul.f32 %v62, %v62
    %v67 = vmul.f32 %v63, %v63
    %v68 = vmul.f32 %v64, %v64
    %v69 = vmul.f32 %v65, %v65
    %v70 = vsub.f32 %v66, %v68
    %v71 = vsub.f32 %v67, %v69
    %vm72 = vcmask 261120
    %v73 = vsel %vm72, %v70, 0.0
    %74 = vadd.xlane.f32.xlu0 %v73
    %v75 = vpop.xlane.xlu0 %74
    %v76 = vsel %vm72, %v71, 0.0
    %77 = vadd.xlane.f32.xlu0 %v76
    %v78 = vpop.xlane.xlu0 %77
    %v79 = vadd.f32 %v75, 1.0
    %v80 = vadd.f32 %v78, 1.0
    %v81 = vmax.f32 %v79, 0.0
    %v82 = vmax.f32 %v80, 0.0
    %vm83 = vcmask 7168
    %v84 = vsel %vm83, %v81, 0.0
    %v85 = vsel %vm83, %v82, 0.0
    %v86 = vadd.f32 %v84, %v85
    %87 = vadd.xlane.f32.xlu0 %v86
    %v88 = vpop.xlane.xlu0 %87
    %v89 = vrot.slane %v88, 4
    %v90 = vadd.f32 %v88, %v89
    %v91 = vrot.slane %v90, 2
    %v92 = vadd.f32 %v90, %v91
    %v93 = vrot.slane %v92, 1
    %v94 = vadd.f32 %v92, %v93
    %s95 = vtos %v94
    %s96 = scalar_lea.smem [#allocation8], 0
    %97 = sst [smem:[%s96]] %s95
    // Predicated region
    $region26: #{tpu_custom_call.1} parent=1 // pred_check
      _
    $region27: #{tpu_custom_call.1} parent=1 // pred_check_branch
      %99 = sbr.rel (0) target = $region29
    $region28: #{tpu_custom_call.1} parent=1 // pred_region
      %s101 = ssub.s32 16, 16
      %102 = vsyncadd [#allocation4], %s101
      %105 = dma.smem_to_hbm [#allocation8], 16, %s3, [#allocation4]
    $region29: #{tpu_custom_call.1} parent=1 // pred_fallthru
      _
    // Predicated region
    $region30: #{tpu_custom_call.1} parent=1 // pred_check
      _
    $region31: #{tpu_custom_call.1} parent=1 // pred_check_branch
      %107 = sbr.rel (0) target = $region33
    $region32: #{tpu_custom_call.1} parent=1 // pred_region
      %108 = dma.done [#allocation4], 16
    $region33: #{tpu_custom_call.1} parent=1 // pred_fallthru
      _
    %109 = sfence
    %110 = vsyncpa [#allocation3], 1
    %111 = vsyncpa [#allocation6], 1
    %112 = vsyncpa [#allocation4], 1

</llo_original>
